<compile_context>
chip_gen: v5e
topology: v5e:2x2
jax: 0.10.0
libtpu: 0.0.40
codegen_flags: <defaults>
</compile_context>

<pallas_src>
import functools

import jax
import jax.numpy as jnp
from jax.experimental import pallas as pl
from jax.experimental.pallas import tpu as pltpu


def _round_up(x, m):
    return ((x + m - 1) // m) * m


def _patch_embed_kernel(x_ref, w_ref, b_ref, o_ref, *, compute_dtype):
    # x_ref: (tile_n, Kp) in the input dtype; w_ref: (Kp, E) compute_dtype;
    # b_ref: (1, E) f32; o_ref: (tile_n, E) out dtype.
    x = x_ref[...].astype(compute_dtype)          # cast folded into the tile
    acc = jnp.dot(x, w_ref[...], preferred_element_type=jnp.float32)
    o_ref[...] = (acc + b_ref[...]).astype(o_ref.dtype)


def prepare_patch_embed_params(weight, bias, in_channels, temporal_patch_size,
                               patch_size, *, compute_dtype=jnp.bfloat16):
    """One-time (model-load) prep: flatten + transpose + K-pad + cast weight.

    weight: (E, C, T, P, P) torch-style Conv3d weight.  bias: (E,).
    Returns (w_t: (Kp, E) compute_dtype, b: (1, E) f32, k, k_padded).
    """
    embed_dim = weight.shape[0]
    k = in_channels * temporal_patch_size * patch_size * patch_size
    k_padded = _round_up(k, 128)
    w = weight.reshape(embed_dim, k).T                      # (K, E)
    if k_padded != k:
        w = jnp.pad(w, ((0, k_padded - k), (0, 0)))         # zero-pad K
    w = w.astype(compute_dtype)
    b = bias.reshape(1, embed_dim).astype(jnp.float32)      # keep f32 for add
    return w, b, k, k_padded


def glm4v_patch_embed(hidden_states, w_t, b_f32, k, k_padded, *,
                      out_dtype, compute_dtype=jnp.bfloat16, tile_n=512):
    """hidden_states: any shape with C*T*P*P trailing elements per patch.
    w_t / b_f32 come from prepare_patch_embed_params (hoisted out of the
    per-call path).  Returns (N, embed_dim) in out_dtype."""
    embed_dim = w_t.shape[1]

    x = hidden_states.reshape(-1, k)                        # (N, K), orig dtype
    if k_padded != k:
        # Zero-pad K so blocks are (8,128)-aligned; padded columns multiply
        # the zero-padded weight rows, so the result is unchanged.
        x = jnp.pad(x, ((0, 0), (0, k_padded - k)))
    n = x.shape[0]

    # Clamp tile_n for small inputs; keep it a multiple of 8 (sublanes).
    tile_n = max(8, _round_up(min(tile_n, _round_up(n, 8)), 8))
    grid_n = pl.cdiv(n, tile_n)

    kernel = functools.partial(_patch_embed_kernel, compute_dtype=compute_dtype)
    # TODO(synk): on v7x, pipeline_mode=pl.Buffered(1) on the constant w/b
    # blocks would skip their useless second buffer and free VMEM for tile_n.
    out = pl.pallas_call(
        kernel,
        out_shape=jax.ShapeDtypeStruct((n, embed_dim), out_dtype),
        grid_spec=pltpu.PrefetchScalarGridSpec(
            num_scalar_prefetch=0,
            grid=(grid_n,),
            in_specs=[
                pl.BlockSpec((tile_n, k_padded), lambda i: (i, 0)),
                pl.BlockSpec((k_padded, embed_dim), lambda i: (0, 0)),
                pl.BlockSpec((1, embed_dim), lambda i: (0, 0)),
            ],
            out_specs=pl.BlockSpec((tile_n, embed_dim), lambda i: (i, 0)),
        ),
        compiler_params=pltpu.CompilerParams(
            dimension_semantics=("parallel",)),
    )(x, w_t, b_f32)
    return out                                              # (N, embed_dim)


if __name__ == "__main__":
    # Small synthetic config (mirrors Glm4vVisionConfig fields used).
    in_channels = 3
    temporal_patch_size = 2
    patch_size = 4
    embed_dim = 128                     # hidden_size
    k = in_channels * temporal_patch_size * patch_size * patch_size  # 96 -> pad to 128
    num_patches = 200                   # NOT a multiple of tile_n -> partial tile

    key = jax.random.PRNGKey(0)
    kx, kw, kb = jax.random.split(key, 3)

    # Input exactly as the torch forward expects: (-1, C*T*P*P) flattened.
    hidden_states = jax.random.normal(kx, (num_patches, k), dtype=jnp.float32)
    # Conv3d parameters: weight (E, C, T, P, P), bias (E,), f32 like torch.
    weight = (jax.random.normal(
        kw, (embed_dim, in_channels, temporal_patch_size, patch_size, patch_size),
        dtype=jnp.float32) * 0.02)
    bias = jax.random.normal(kb, (embed_dim,), dtype=jnp.float32) * 0.01

    # One-time weight prep (transpose / K-pad / bf16 cast), then the kernel.
    w_t, b_f32, k_, k_padded = prepare_patch_embed_params(
        weight, bias, in_channels, temporal_patch_size, patch_size)
    out = glm4v_patch_embed(
        hidden_states, w_t, b_f32, k_, k_padded,
        out_dtype=weight.dtype, tile_n=64)   # small tile for the tiny demo
    jax.block_until_ready(out)

    # Pure-JAX reference of the degenerate conv: bf16 GEMM with f32
    # accumulation + f32 bias, matching the kernel's compute policy.
    x_ref = hidden_states.reshape(-1, k).astype(jnp.bfloat16)
    w_ref = weight.reshape(embed_dim, k).T.astype(jnp.bfloat16)
    ref = (jnp.dot(x_ref, w_ref, preferred_element_type=jnp.float32)
           + bias.astype(jnp.float32)).astype(weight.dtype)

    assert out.shape == (num_patches, embed_dim)
    assert jnp.allclose(out, ref, atol=1e-2, rtol=1e-2), float(
        jnp.max(jnp.abs(out - ref)))

    print("KERNEL_OK")
</pallas_src>

<mosaic_0001>
module attributes {stable_mosaic.version = 11 : i64} {
  func.func @_patch_embed_kernel(%arg0: i32, %arg1: memref<64x128xf32, #tpu.memory_space<vmem>>, %arg2: memref<128x128xbf16, #tpu.memory_space<vmem>>, %arg3: memref<1x128xf32, #tpu.memory_space<vmem>>, %arg4: memref<64x128xf32, #tpu.memory_space<vmem>>) attributes {dimension_semantics = [#tpu.dimension_semantics<parallel>], iteration_bounds = array<i64: 4>, scalar_prefetch = 0 : i64, scratch_operands = 0 : i64, tpu.core_type = #tpu.core_type<tc>, window_params = [{transform_indices = @transform_0, window_bounds = array<i64: 64, 128>}, {pipeline_mode = #tpu.pipeline_mode<synchronous>, transform_indices = @transform_1, window_bounds = array<i64: 128, 128>}, {pipeline_mode = #tpu.pipeline_mode<synchronous>, transform_indices = @transform_2, window_bounds = array<i64: 1, 128>}, {transform_indices = @transform_3, window_bounds = array<i64: 64, 128>}]} {
    %c0 = arith.constant 0 : index
    %c0_0 = arith.constant 0 : index
    %0 = vector.load %arg1[%c0, %c0_0] : memref<64x128xf32, #tpu.memory_space<vmem>>, vector<64x128xf32>
    %1 = arith.truncf %0 : vector<64x128xf32> to vector<64x128xbf16>
    %c0_1 = arith.constant 0 : index
    %c0_2 = arith.constant 0 : index
    %2 = vector.load %arg2[%c0_1, %c0_2] : memref<128x128xbf16, #tpu.memory_space<vmem>>, vector<128x128xbf16>
    %cst = arith.constant dense<0.000000e+00> : vector<64x128xf32>
    %3 = tpu.matmul %1, %2, %cst {dimension_numbers = #tpu.dot_dimension_numbers<[1], [0], [0], [1], [0, 0, 1, 1], [], []>} : vector<64x128xbf16>, vector<128x128xbf16>, vector<64x128xf32> -> vector<64x128xf32>
    %c0_3 = arith.constant 0 : index
    %c0_4 = arith.constant 0 : index
    %4 = vector.load %arg3[%c0_3, %c0_4] : memref<1x128xf32, #tpu.memory_space<vmem>>, vector<1x128xf32>
    %5 = vector.broadcast %4 : vector<1x128xf32> to vector<64x128xf32>
    %6 = arith.addf %3, %5 : vector<64x128xf32>
    %c0_5 = arith.constant 0 : index
    %c0_6 = arith.constant 0 : index
    %7 = vector.load %arg4[%c0_5, %c0_6] : memref<64x128xf32, #tpu.memory_space<vmem>>, vector<64x128xf32>
    tpu.vector_store %arg4[%c0_5, %c0_6], %6 {strides = array<i32>} : memref<64x128xf32, #tpu.memory_space<vmem>>, vector<64x128xf32>,
    return
  }
  func.func @transform_0(%arg0: i32) -> (i32, i32) {
    %c0_i32 = arith.constant 0 : i32
    %c0_i32_0 = arith.constant 0 : i32
    return %arg0, %c0_i32 : i32, i32
  }
  func.func @transform_1(%arg0: i32) -> (i32, i32) {
    %c0_i32 = arith.constant 0 : i32
    %c0_i32_0 = arith.constant 0 : i32
    %c0_i32_1 = arith.constant 0 : i32
    return %c0_i32, %c0_i32_0 : i32, i32
  }
  func.func @transform_2(%arg0: i32) -> (i32, i32) {
    %c0_i32 = arith.constant 0 : i32
    %c0_i32_0 = arith.constant 0 : i32
    %c0_i32_1 = arith.constant 0 : i32
    return %c0_i32, %c0_i32_0 : i32, i32
  }
  func.func @transform_3(%arg0: i32) -> (i32, i32) {
    %c0_i32 = arith.constant 0 : i32
    %c0_i32_0 = arith.constant 0 : i32
    return %arg0, %c0_i32 : i32, i32
  }
}

</mosaic_0001>

<llo_original>
// kernel: tpu_custom_call.1
$region0: #{tpu_custom_call.1}
  #allocation0 [shape = 'u32[]', space=smem, size = 0x4, offset = 0x4, fixed_abs, tag = 'smem constant byte address 0x4 - core index']
  #allocation1 [shape = 'u32[72,128]{1,0:T(1,128)}', space=vmem, size = 0x9000, scoped, tag = 'internal scratch']
  %s0 = inlined_call_operand.hbm [shape: f32[200,128], index: 0, kind: input, shape index: {}]
  %s1 = inlined_call_operand.hbm [shape: bf16[128,128], index: 1, kind: input, shape index: {}]
  %s2 = inlined_call_operand.vmem [shape: f32[1,128], index: 2, kind: input, shape index: {}]
  %s3 = inlined_call_operand.hbm [shape: f32[200,128], index: 3, kind: output, shape index: {}]
  %s4 = sld [smem:[#allocation0]]
  $region53: #{tpu_custom_call.1} parent=0
    _
  %s6 = ssub.s32 1, %s4
  %s7 = scalar_select 0, %s6, %s4
  $region1: #{tpu_custom_call.1} parent=0
    #allocation2 [shape = 'u8[65536]{0}', space=vmem, size = 0x10000, scoped, tag = 'input window, operand 0']
    #allocation3 [shape = 's32[2]{0}', space=sflag, size = 0x8, scoped, tag = 'scoped memory for tpu_custom_call.1']
    #allocation4 [shape = 's32[2]{0}', space=sflag, size = 0x8, scoped, tag = 'scoped memory for tpu_custom_call.1']
    #allocation5 [shape = 'u8[32768]{0}', space=vmem, size = 0x8000, scoped, tag = 'input window, operand 1, single buffered']
    #allocation6 [shape = 's32[1]{0}', space=sflag, size = 0x4, scoped, tag = 'scoped memory for tpu_custom_call.1']
    #allocation7 [shape = 'u8[65536]{0}', space=vmem, size = 0x10000, scoped, tag = 'output window, operand 0']
    %8 = vsyncpa [#allocation3], 0
    %s9 = scalar_lea.sflag [#allocation3], 1
    %10 = vsyncpa %s9, 0
    %11 = vsyncpa [#allocation6], 0
    %12 = vsyncpa [#allocation4], 0
    %s13 = scalar_lea.sflag [#allocation4], 1
    %14 = vsyncpa %s13, 0
    loop: start=0, step=1, limit=6
    $region2: #{tpu_custom_call.1} parent=1 // loop_pre_header
      _
    $region3: #{tpu_custom_call.1} parent=1 // loop_header
      %s16 = sphi 0, %s20
      %p17 = scmp.ge.s32.totalorder %s16, 6
      %s26 = sphi 0, %s28
      %s29 = sphi 0, %s26
      %s30 = sphi 0, %s29
      %s46 = sphi 0, %s30
      %s50 = sphi 0, %s50
      %s52 = sphi 0, %s50
      %s53 = sphi 0, %s52
      %s67 = sphi 0, %s53
      %s71 = sphi 0, %s71
      %s73 = sphi 0, %s71
      %s74 = sphi 0, %s73
      %s88 = sphi 0, %s74
      %s94 = sphi 0, %s96
      %s97 = sphi 0, %s94
      %s98 = sphi 0, %s97
      %s114 = sphi 0, %s98
    $region4: #{tpu_custom_call.1} parent=1 // loop_header_branch
      %19 = sbr.rel (%p17) target = $region8
    $region5: #{tpu_custom_call.1} parent=1 // loop_body
      %s21 = ssub.s32 %s16, 1
      %s22 = ssub.s32 %s16, 2
      %s23 = sadd.s32 %s16, 1
      %s24 = ssub.s32 %s16, %s23
      %p25 = scmp.eq.s32.totalorder %s24, 0
      %s27 = sadd.s32 %s26, 1
      %s28 = scalar_select %p25, %s26, %s27
      %p31 = pneg %p25
      %p32 = scmp.eq.s32.totalorder %s16, 3
      %p33 = por %p31, %p32
      %p34 = scmp.ne.s32.totalorder %s26, %s29
      %p35 = scmp.eq.s32.totalorder %s16, 0
      %p36 = por %p34, %p35
      %p37 = scmp.ne.s32.totalorder %s26, %s29
      %p38 = scmp.eq.s32.totalorder %s21, 3
      %p39 = por %p37, %p38
      %p40 = scmp.ne.s32.totalorder %s29, %s30
      %p41 = scmp.eq.s32.totalorder %s21, 0
      %p42 = por %p40, %p41
      %p43 = scmp.ne.s32.totalorder %s29, %s30
      %p44 = scmp.eq.s32.totalorder %s22, 3
      %p45 = por %p43, %p44
      %p47 = scmp.ne.s32.totalorder %s30, %s46
      %p48 = scmp.eq.s32.totalorder %s22, 0
      %p49 = por %p47, %p48
      %s51 = sadd.s32 %s50, 1
      %p54 = scmp.eq.s32.totalorder %s16, 3
      %p55 = scmp.ne.s32.totalorder %s50, %s52
      %p56 = scmp.eq.s32.totalorder %s16, 0
      %p57 = por %p55, %p56
      %p58 = scmp.ne.s32.totalorder %s50, %s52
      %p59 = scmp.eq.s32.totalorder %s21, 3
      %p60 = por %p58, %p59
      %p61 = scmp.ne.s32.totalorder %s52, %s53
      %p62 = scmp.eq.s32.totalorder %s21, 0
      %p63 = por %p61, %p62
      %p64 = scmp.ne.s32.totalorder %s52, %s53
      %p65 = scmp.eq.s32.totalorder %s22, 3
      %p66 = por %p64, %p65
      %p68 = scmp.ne.s32.totalorder %s53, %s67
      %p69 = scmp.eq.s32.totalorder %s22, 0
      %p70 = por %p68, %p69
      %s72 = sadd.s32 %s71, 1
      %p75 = scmp.eq.s32.totalorder %s16, 3
      %p76 = scmp.ne.s32.totalorder %s71, %s73
      %p77 = scmp.eq.s32.totalorder %s16, 0
      %p78 = por %p76, %p77
      %p79 = scmp.ne.s32.totalorder %s71, %s73
      %p80 = scmp.eq.s32.totalorder %s21, 3
      %p81 = por %p79, %p80
      %p82 = scmp.ne.s32.totalorder %s73, %s74
      %p83 = scmp.eq.s32.totalorder %s21, 0
      %p84 = por %p82, %p83
      %p85 = scmp.ne.s32.totalorder %s73, %s74
      %p86 = scmp.eq.s32.totalorder %s22, 3
      %p87 = por %p85, %p86
      %p89 = scmp.ne.s32.totalorder %s74, %s88
      %p90 = scmp.eq.s32.totalorder %s22, 0
      %p91 = por %p89, %p90
      %s92 = ssub.s32 %s16, %s23
      %p93 = scmp.eq.s32.totalorder %s92, 0
      %s95 = sadd.s32 %s94, 1
      %s96 = scalar_select %p93, %s94, %s95
      %p99 = pneg %p93
      %p100 = scmp.eq.s32.totalorder %s16, 3
      %p101 = por %p99, %p100
      %p102 = scmp.ne.s32.totalorder %s94, %s97
      %p103 = scmp.eq.s32.totalorder %s16, 0
      %p104 = por %p102, %p103
      %p105 = scmp.ne.s32.totalorder %s94, %s97
      %p106 = scmp.eq.s32.totalorder %s21, 3
      %p107 = por %p105, %p106
      %p108 = scmp.ne.s32.totalorder %s97, %s98
      %p109 = scmp.eq.s32.totalorder %s21, 0
      %p110 = por %p108, %p109
      %p111 = scmp.ne.s32.totalorder %s97, %s98
      %p112 = scmp.eq.s32.totalorder %s22, 3
      %p113 = por %p111, %p112
      %p115 = scmp.ne.s32.totalorder %s98, %s114
      %p116 = scmp.eq.s32.totalorder %s22, 0
      %p117 = por %p115, %p116
      %p118 = scmp.le.s32.totalorder 1, %s16
      %p119 = scmp.lt.s32.totalorder %s16, 5
      %p120 = pnand %p118, %p119
      %p121 = pneg %p120
      // Predicated region
      $region9: #{tpu_custom_call.1} parent=5 // pred_check
        _
      $region10: #{tpu_custom_call.1} parent=5 // pred_check_branch
        %123 = sbr.rel (%p120) target = $region12
      $region11: #{tpu_custom_call.1} parent=5 // pred_region
        %s124 = ssub.s32 %s16, 1
        // Predicated region
        $region13: #{tpu_custom_call.1} parent=11 // pred_check
          %p125 = pneg %p63
        $region14: #{tpu_custom_call.1} parent=11 // pred_check_branch
          %127 = sbr.rel (%p125) target = $region16
        $region15: #{tpu_custom_call.1} parent=11 // pred_region
          %129 = vsyncadd [#allocation6], 0
          %s130 = sshll.u32 %s1, 4
          %s131 = int_to_ptr.hbm [resolvable:$true] %s130
          %s132 = sshll.u32 [#allocation5], 4
          %s133 = int_to_ptr.vmem [resolvable:$true] %s132
          %138 = dma.hbm_to_vmem [thread:$0]  %s131, 1024, %s133, [#allocation6], 64, 64, 4
        $region16: #{tpu_custom_call.1} parent=11 // pred_fallthru
          _
        // Predicated region
        $region17: #{tpu_custom_call.1} parent=11 // pred_check
          %p139 = pneg %p84
        $region18: #{tpu_custom_call.1} parent=11 // pred_check_branch
          %141 = sbr.rel (%p139) target = $region20
        $region19: #{tpu_custom_call.1} parent=11 // pred_region
          _
        $region20: #{tpu_custom_call.1} parent=11 // pred_fallthru
          _
      $region12: #{tpu_custom_call.1} parent=5 // pred_fallthru
        _
      %p142 = scmp.lt.s32.totalorder %s16, 4
      // Predicated region
      $region21: #{tpu_custom_call.1} parent=5 // pred_check
        %p143 = pneg %p142
      $region22: #{tpu_custom_call.1} parent=5 // pred_check_branch
        %145 = sbr.rel (%p143) target = $region24
      $region23: #{tpu_custom_call.1} parent=5 // pred_region
        // Predicated region
        $region25: #{tpu_custom_call.1} parent=23 // pred_check
          %p146 = pneg %p36
        $region26: #{tpu_custom_call.1} parent=23 // pred_check_branch
          %148 = sbr.rel (%p146) target = $region28
        $region27: #{tpu_custom_call.1} parent=23 // pred_region
          %s149 = sand.u32 %s26, 1
          %s150 = scalar_lea.sflag [#allocation3], %s149
          %s151 = sand.u32 %s26, 1
          %s152 = smul.addr %s151, 64
          %s153 = scalar_lea.vmem [#allocation2], %s152
          %s154 = smul.u32 8, %s16
          %s155 = ssub.s32 25, %s154
          %p156 = scmp.lt.s32.totalorder %s155, 8
          %s157 = scalar_select %p156, %s155, 8
          %s158 = smul.u32 8, %s157
          %s159 = ssub.s32 64, %s158
          %s160 = sshll.u32 %s159, 4
          %161 = vsyncadd %s150, %s160
          %p162 = scmp.ne.s32.totalorder 0, %s158
          %s163 = smul.addr %s154, 8
          %s164 = scalar_lea.hbm %s0, %s163
          %s165 = smul.u32 8, %s157
          %s166 = sshll.u32 %s164, 4
          %s167 = int_to_ptr.hbm [resolvable:$true] %s166
          %s168 = sshll.u32 %s153, 4
          %s169 = int_to_ptr.vmem [resolvable:$true] %s168
          %s170 = sshll.u32 %s165, 4
          %174 = dma.hbm_to_vmem [thread:$0]  (%p162), %s167, %s170, %s169, %s150, 128, 128, 8
        $region28: #{tpu_custom_call.1} parent=23 // pred_fallthru
          _
      $region24: #{tpu_custom_call.1} parent=5 // pred_fallthru
        _
      %p175 = scmp.le.s32.totalorder 1, %s16
      %p176 = scmp.lt.s32.totalorder %s16, 5
      %p177 = pnand %p175, %p176
      %p178 = pneg %p177
      // Predicated region
      $region29: #{tpu_custom_call.1} parent=5 // pred_check
        _
      $region30: #{tpu_custom_call.1} parent=5 // pred_check_branch
        %180 = sbr.rel (%p177) target = $region32
      $region31: #{tpu_custom_call.1} parent=5 // pred_region
        %s181 = ssub.s32 %s16, 1
        %s182 = sand.u32 %s29, 1
        %s183 = scalar_lea.sflag [#allocation3], %s182
        %s184 = sand.u32 %s29, 1
        %s185 = smul.addr %s184, 64
        %s186 = scalar_lea.vmem [#allocation2], %s185
        // Predicated region
        $region33: #{tpu_custom_call.1} parent=31 // pred_check
          %p187 = pneg %p42
        $region34: #{tpu_custom_call.1} parent=31 // pred_check_branch
          %189 = sbr.rel (%p187) target = $region36
        $region35: #{tpu_custom_call.1} parent=31 // pred_region
          %191 = dma.done %s183, 1024
        $region36: #{tpu_custom_call.1} parent=31 // pred_fallthru
          _
        // Predicated region
        $region37: #{tpu_custom_call.1} parent=31 // pred_check
          %p192 = pneg %p63
        $region38: #{tpu_custom_call.1} parent=31 // pred_check_branch
          %194 = sbr.rel (%p192) target = $region40
        $region39: #{tpu_custom_call.1} parent=31 // pred_region
          %196 = dma.done [#allocation6], 1024
        $region40: #{tpu_custom_call.1} parent=31 // pred_fallthru
          _
        %s197 = sand.u32 %s29, 1
        %s198 = scalar_lea.sflag [#allocation3], %s197
        %s199 = sand.u32 %s29, 1
        %s200 = smul.addr %s199, 64
        %s201 = scalar_lea.vmem [#allocation2], %s200
        %p202 = pneg %p42
        %p203 = pneg %p39
        %p204 = pneg %p63
        %p205 = pneg %p60
        %p206 = pneg %p84
        %p207 = pneg %p81
        %p208 = pneg %p110
        %p209 = pneg %p107
        %s210 = sand.u32 %s97, 1
        %s211 = scalar_lea.sflag [#allocation4], %s210
        %s212 = sand.u32 %s97, 1
        %s213 = smul.addr %s212, 64
        %s214 = scalar_lea.vmem [#allocation7], %s213
        %s215 = smul.u32 8, %s21
        %s216 = ssub.s32 25, %s215
        %p217 = scmp.lt.s32.totalorder %s216, 8
        %s218 = scalar_select %p217, %s216, 8
        %s219 = smul.u32 8, %s218
        %s220 = smul.u32 8, %s21
        %s221 = ssub.s32 25, %s220
        %p222 = scmp.lt.s32.totalorder %s221, 8
        %s223 = scalar_select %p222, %s221, 8
        %s224 = smul.u32 8, %s223
        %v225 = vld [vmem:[%s186] sm:$0xff]
        %v226 = vld [vmem:[%s186 + $0x8] sm:$0xff]
        %v227 = vld [vmem:[%s186 + $0x10] sm:$0xff]
        %v228 = vld [vmem:[%s186 + $0x18] sm:$0xff]
        %v229 = vld [vmem:[%s186 + $0x20] sm:$0xff]
        %v230 = vld [vmem:[%s186 + $0x28] sm:$0xff]
        %v231 = vld [vmem:[%s186 + $0x30] sm:$0xff]
        %v232 = vld [vmem:[%s186 + $0x38] sm:$0xff]
        %v233 = vpack.c.bf16 %v226, %v225
        %v234 = vpack.c.bf16 %v228, %v227
        %v235 = vpack.c.bf16 %v230, %v229
        %v236 = vpack.c.bf16 %v232, %v231
        %v237 = vld [vmem:[#allocation5] sm:$0xf]
        %v238 = vld [vmem:[#allocation5 + $0x4] sm:$0xf]
        %v239 = vld [vmem:[#allocation5 + $0x8] sm:$0xf]
        %v240 = vld [vmem:[#allocation5 + $0xc] sm:$0xf]
        %v241 = vld [vmem:[#allocation5 + $0x10] sm:$0xf]
        %v242 = vld [vmem:[#allocation5 + $0x14] sm:$0xf]
        %v243 = vld [vmem:[#allocation5 + $0x18] sm:$0xf]
        %v244 = vld [vmem:[#allocation5 + $0x1c] sm:$0xf]
        %v245 = vld [vmem:[#allocation5 + $0x20] sm:$0xf]
        %v246 = vld [vmem:[#allocation5 + $0x24] sm:$0xf]
        %v247 = vld [vmem:[#allocation5 + $0x28] sm:$0xf]
        %v248 = vld [vmem:[#allocation5 + $0x2c] sm:$0xf]
        %v249 = vld [vmem:[#allocation5 + $0x30] sm:$0xf]
        %v250 = vld [vmem:[#allocation5 + $0x34] sm:$0xf]
        %v251 = vld [vmem:[#allocation5 + $0x38] sm:$0xf]
        %v252 = vld [vmem:[#allocation5 + $0x3c] sm:$0xf]
        %v253 = vld [vmem:[%s2] sm:$0x1]
        %v255 = vperm.slane %v253, 0
        %v273 = vunpack.c.l.b16 %v237
        %v274 = vunpack.c.l.b16 %v238
        %v275 = vunpack.c.l.b16 %v239
        %v276 = vunpack.c.l.b16 %v240
        %v277 = vunpack.c.l.b16 %v241
        %v278 = vunpack.c.l.b16 %v242
        %v279 = vunpack.c.l.b16 %v243
        %v280 = vunpack.c.l.b16 %v244
        %v281 = vunpack.c.l.b16 %v245
        %v282 = vunpack.c.l.b16 %v246
        %v283 = vunpack.c.l.b16 %v247
        %v284 = vunpack.c.l.b16 %v248
        %v285 = vunpack.c.l.b16 %v249
        %v286 = vunpack.c.l.b16 %v250
        %v287 = vunpack.c.l.b16 %v251
        %v288 = vunpack.c.l.b16 %v252
        %v289 = vpack.c.b16 %v274, %v273
        %v290 = vpack.c.b16 %v276, %v275
        %v291 = vpack.c.b16 %v278, %v277
        %v292 = vpack.c.b16 %v280, %v279
        %v293 = vpack.c.b16 %v282, %v281
        %v294 = vpack.c.b16 %v284, %v283
        %v295 = vpack.c.b16 %v286, %v285
        %v296 = vpack.c.b16 %v288, %v287
        %305 = vmatpush.bf16.msra.mxu0 %v296
        %306 = vmatpush.bf16.msra.mxu0 %v295
        %307 = vmatpush.bf16.msra.mxu0 %v294
        %308 = vmatpush.bf16.msra.mxu0 %v293
        %309 = vmatpush.bf16.msra.mxu0 %v292
        %310 = vmatpush.bf16.msra.mxu0 %v291
        %311 = vmatpush.bf16.msra.mxu0 %v290
        %312 = vmatpush.bf16.msra.mxu0 %v289
        %313 = vmatmul.bf16.gmra.mxu0 %v233
        %v314 = vpop.f32.mrf.mxu0
        %v315 = vadd.f32 %v255, %v314
        %v316 = vpop.f32.mrf.mxu0
        %v317 = vadd.f32 %v255, %v316
        %318 = vmatmul.bf16.gmra.mxu0 %v234
        %v319 = vpop.f32.mrf.mxu0
        %v320 = vadd.f32 %v255, %v319
        %v321 = vpop.f32.mrf.mxu0
        %v322 = vadd.f32 %v255, %v321
        %323 = vmatmul.bf16.gmra.mxu0 %v235
        %v324 = vpop.f32.mrf.mxu0
        %v325 = vadd.f32 %v255, %v324
        %v326 = vpop.f32.mrf.mxu0
        %v327 = vadd.f32 %v255, %v326
        %328 = vmatmul.bf16.gmra.mxu0 %v236
        %v329 = vpop.f32.mrf.mxu0
        %v330 = vadd.f32 %v255, %v329
        %v331 = vpop.f32.mrf.mxu0
        %v332 = vadd.f32 %v255, %v331
        %333 = vdwg.mxu0
        %334 = vst [vmem:[%s214] sm:$0xff] %v315
        %335 = vst [vmem:[%s214 + $0x8] sm:$0xff] %v317
        %336 = vst [vmem:[%s214 + $0x10] sm:$0xff] %v320
        %337 = vst [vmem:[%s214 + $0x18] sm:$0xff] %v322
        %338 = vst [vmem:[%s214 + $0x20] sm:$0xff] %v325
        %339 = vst [vmem:[%s214 + $0x28] sm:$0xff] %v327
        %340 = vst [vmem:[%s214 + $0x30] sm:$0xff] %v330
        %341 = vst [vmem:[%s214 + $0x38] sm:$0xff] %v332
        %s342 = sand.u32 %s97, 1
        %s343 = scalar_lea.sflag [#allocation4], %s342
        %s344 = sand.u32 %s97, 1
        %s345 = smul.addr %s344, 64
        %s346 = scalar_lea.vmem [#allocation7], %s345
        // Predicated region
        $region41: #{tpu_custom_call.1} parent=31 // pred_check
          %p347 = pneg %p107
        $region42: #{tpu_custom_call.1} parent=31 // pred_check_branch
          %349 = sbr.rel (%p347) target = $region44
        $region43: #{tpu_custom_call.1} parent=31 // pred_region
          %s350 = smul.u32 8, %s21
          %s351 = ssub.s32 25, %s350
          %p352 = scmp.lt.s32.totalorder %s351, 8
          %s353 = scalar_select %p352, %s351, 8
          %s354 = smul.u32 8, %s353
          %s355 = ssub.s32 64, %s354
          %s356 = sshll.u32 %s355, 4
          %357 = vsyncadd %s343, %s356
          %p358 = scmp.ne.s32.totalorder 0, %s354
          %s359 = smul.addr %s350, 8
          %s360 = scalar_lea.hbm %s3, %s359
          %s361 = smul.u32 8, %s353
          %s362 = sshll.u32 %s346, 4
          %s363 = int_to_ptr.vmem [resolvable:$true] %s362
          %s364 = sshll.u32 %s360, 4
          %s365 = int_to_ptr.hbm [resolvable:$true] %s364
          %s366 = sshll.u32 %s361, 4
          %370 = dma.vmem_to_hbm [thread:$0]  (%p358), %s363, %s366, %s365, %s343, 128, 128, 8
        $region44: #{tpu_custom_call.1} parent=31 // pred_fallthru
          _
      $region32: #{tpu_custom_call.1} parent=5 // pred_fallthru
        _
      %p371 = scmp.le.s32.totalorder 2, %s16
      // Predicated region
      $region45: #{tpu_custom_call.1} parent=5 // pred_check
        %p372 = pneg %p371
      $region46: #{tpu_custom_call.1} parent=5 // pred_check_branch
        %374 = sbr.rel (%p372) target = $region48
      $region47: #{tpu_custom_call.1} parent=5 // pred_region
        %s375 = ssub.s32 %s16, 2
        // Predicated region
        $region49: #{tpu_custom_call.1} parent=47 // pred_check
          %p376 = pneg %p113
        $region50: #{tpu_custom_call.1} parent=47 // pred_check_branch
          %378 = sbr.rel (%p376) target = $region52
        $region51: #{tpu_custom_call.1} parent=47 // pred_region
          %s379 = sand.u32 %s98, 1
          %s380 = scalar_lea.sflag [#allocation4], %s379
          %s381 = sand.u32 %s98, 1
          %s382 = smul.addr %s381, 64
          %s383 = scalar_lea.vmem [#allocation7], %s382
          %385 = dma.done %s380, 1024
        $region52: #{tpu_custom_call.1} parent=47 // pred_fallthru
          _
      $region48: #{tpu_custom_call.1} parent=5 // pred_fallthru
        _
    $region6: #{tpu_custom_call.1} parent=1 // loop_footer
      %s20 = sadd.s32 1, %s16
    $region7: #{tpu_custom_call.1} parent=1 // loop_footer_branch
      %15 = sbr.rel target = $region3
    $region8: #{tpu_custom_call.1} parent=1 // loop_exit
      _
    %386 = vsyncpa [#allocation3], 1
    %s387 = scalar_lea.sflag [#allocation3], 1
    %388 = vsyncpa %s387, 1
    %389 = vsyncpa [#allocation6], 1
    %390 = vsyncpa [#allocation4], 1
    %s391 = scalar_lea.sflag [#allocation4], 1
    %392 = vsyncpa %s391, 1

</llo_original>
